<compile_context>
chip_gen: v6e
topology: v6e:2x2x1
jax: 0.10.0
libtpu: 0.0.40
codegen_flags: <defaults>
</compile_context>

<pallas_src>
import math

import jax
import jax.numpy as jnp
import numpy as np
from jax.experimental import pallas as pl
from jax.experimental.pallas import tpu as pltpu


def _make_kernel(bt, ns):
    """Per-grid-step kernel over BT batch elements; ns = class dim padded to 8."""

    def kernel(src_ref, wproj_ref, lhs_ref, const_ref, out_ref):
        # src_ref:   (BT, C, L)  bf16  flattened backbone features (no transpose)
        # wproj_ref: (D, C)      bf16  Conv1d(k=1) weight (bias folded into const)
        # lhs_ref:   (2*Ns, D)   bf16  rows [0,N): query_embed/sqrt(D),
        #                              rows [Ns,Ns+N): GroupWiseLinear W
        # const_ref: (1, Ns)     f32   per-class constant (conv bias + residual + fc bias)
        # out_ref:   (1, BT, Ns) f32   logits block
        wproj = wproj_ref[...]          # resident weights, loaded once per step
        lhs = lhs_ref[...]
        const = const_ref[0, :]         # (Ns,)

        for t in range(bt):             # static, small BT; store per-t (short live ranges)
            # ---- input_proj (Conv1d k=1); lane dim = L >= 128 --------------
            proj = jnp.dot(wproj, src_ref[t],
                           preferred_element_type=jnp.float32)       # (D, L) f32

            # ---- fused scores + fc projection in one MXU call --------------
            sg = jnp.dot(lhs, proj.astype(jnp.bfloat16),
                         preferred_element_type=jnp.float32)         # (2Ns, L) f32
            s = sg[:ns]                                               # (Ns, L) scores
            g = sg[ns:]                                               # (Ns, L) fc proj

            # ---- online softmax stats, f32 elementwise (v5e-safe) ----------
            m = jnp.max(s, axis=-1, keepdims=True)
            p = jnp.exp(s - m)                                        # unnormalized attn
            denom = jnp.sum(p, axis=-1)                               # (Ns,)
            num = jnp.sum(p * g, axis=-1)                             # (Ns,)

            # logits = attn-weighted g + const; normalization deferred to a
            # per-class scalar multiply (EUP reciprocal, approx is fine here).
            out_ref[0, t, :] = num * pl.reciprocal(denom, approx=True) + const

    return kernel


def _device_kind():
    try:
        return jax.devices()[0].device_kind.lower()
    except Exception:  # pragma: no cover - backend not initialized
        return ""


def _choose_block_batch(batch, max_bt=8):
    """Generation-aware batch blocking.

    * dual-TC (v7x): aim for >= 4 grid steps (>= 2 per TensorCore) so each
      core gets double-buffered pipelining.
    * single-TC (v5e/v6e): extra steps only add fixed per-step overhead at
      these per-step costs, so take the largest divisor of B (grid as small
      as possible), preferring BT up to 8 (full output sublanes).
    """
    kind = _device_kind()
    dual_tc = ("v7" in kind) or ("7x" in kind)
    target_steps = 4 if dual_tc else 1
    best = 1
    for cand in range(1, min(batch, max_bt) + 1):
        if batch % cand == 0 and batch // cand >= target_steps:
            best = cand
    return best


def tranmodel_forward(x, params, *, block_batch=None):
    """x: (B, C, H, W) float32 image-like input. Returns (B, num_class) logits."""
    wproj, bproj, qembed, wfc, bfc = params
    B, C, H, W = x.shape
    L = H * W
    D = wproj.shape[0]
    N = qembed.shape[0]
    Ns = ((N + 7) // 8) * 8            # sublane-granular class padding only

    # backbone stand-in: flatten spatial dims (contiguous reshape; no HBM
    # transpose/concat pass over the activations before the kernel).
    # TODO(synk): real backbone is an injected external CNN module.
    src = x.reshape(B, C, L).astype(jnp.bfloat16)

    # Grid-invariant MXU operands prepared once in the wrapper.
    f32 = jnp.float32
    scale = 1.0 / math.sqrt(D)
    lhs = jnp.zeros((2 * Ns, D), f32)
    lhs = lhs.at[:N].set(qembed.astype(f32) * scale)      # scaled queries
    lhs = lhs.at[Ns:Ns + N].set(wfc.astype(f32))          # GroupWiseLinear W
    lhs = lhs.astype(jnp.bfloat16)
    wproj_bf = wproj.astype(jnp.bfloat16)

    # Exact f32 fold of (a) Conv1d bias through the fc path, (b) the residual
    # query term, (c) the fc bias.  The q-side conv-bias term cancels in the
    # softmax (shift invariance), so bproj never enters the kernel.
    const = (wfc.astype(f32) @ bproj.astype(f32)
             + jnp.sum(wfc.astype(f32) * qembed.astype(f32), axis=-1)
             + bfc.reshape(-1).astype(f32))                # (N,)
    const_p = jnp.zeros((1, Ns), f32).at[0, :N].set(const)

    BT = _choose_block_batch(B) if block_batch is None else block_batch
    assert B % BT == 0, "block_batch must divide the batch size"
    grid_b = B // BT

    kernel = _make_kernel(BT, Ns)

    out = pl.pallas_call(
        kernel,
        out_shape=jax.ShapeDtypeStruct((grid_b, BT, Ns), jnp.float32),
        grid_spec=pltpu.PrefetchScalarGridSpec(
            num_scalar_prefetch=0,
            grid=(grid_b,),
            in_specs=[
                # per-step batch block of flattened features (streaming input)
                pl.BlockSpec((BT, C, L), lambda b: (b, 0, 0)),
                # weights: constant index_maps -> stay VMEM-resident
                pl.BlockSpec((D, C), lambda b: (0, 0)),
                pl.BlockSpec((2 * Ns, D), lambda b: (0, 0)),
                pl.BlockSpec((1, Ns), lambda b: (0, 0)),
            ],
            out_specs=pl.BlockSpec((1, BT, Ns), lambda b: (b, 0, 0)),
        ),
        compiler_params=pltpu.CompilerParams(
            dimension_semantics=("parallel",)),
        # NOTE: at realistic backbone sizes (C~2048, large BT*L) re-budget BT
        # against VMEM (v7x: 64 MiB physical / 32 MiB default scoped; v5e:
        # 16 MiB default scoped), set vmem_limit_bytes explicitly, and
        # consider pipeline_mode=pl.Buffered(1) on the resident weight specs /
        # pl.Buffered(3) on src if the src DMA shows up exposed in the trace.
    )(src, wproj_bf, lhs, const_p)

    return out.reshape(B, Ns)[:, :N]


def init_params(key, num_channels, hidden_dim, num_class):
    k1, k2, k3, k4, k5 = jax.random.split(key, 5)
    # Conv1d(kernel_size=1) default-style uniform init, deterministic.
    bound = 1.0 / math.sqrt(num_channels)
    wproj = jax.random.uniform(k1, (hidden_dim, num_channels), jnp.float32,
                               -bound, bound)
    bproj = jax.random.uniform(k2, (hidden_dim,), jnp.float32, -bound, bound)
    # nn.Embedding default ~ N(0, 1)
    qembed = jax.random.normal(k3, (num_class, hidden_dim), jnp.float32)
    # GroupWiseLinear init: uniform(-1/sqrt(hidden_dim), 1/sqrt(hidden_dim))
    stdv = 1.0 / math.sqrt(hidden_dim)
    wfc = jax.random.uniform(k4, (num_class, hidden_dim), jnp.float32,
                             -stdv, stdv)
    bfc = jax.random.uniform(k5, (1, num_class), jnp.float32, -stdv, stdv)
    return wproj, bproj, qembed, wfc, bfc


def tranmodel_reference(x, params):
    """Pure-JAX f32 reference of the same math (un-refactored), for checking."""
    wproj, bproj, qembed, wfc, bfc = params
    B, C, H, W = x.shape
    src = x.reshape(B, C, H * W)
    proj = jnp.einsum('dc,bcl->bdl', wproj, src) + bproj[None, :, None]
    scores = jnp.einsum('nd,bdl->bnl', qembed, proj) / math.sqrt(qembed.shape[-1])
    attn = jax.nn.softmax(scores, axis=-1)
    hs = jnp.einsum('bnl,bdl->bnd', attn, proj) + qembed[None]
    return jnp.sum(wfc[None] * hs, axis=-1) + bfc


if __name__ == "__main__":
    B, C, H, W = 4, 4, 16, 16        # backbone.num_channels = C, L = H*W = 256
    hidden_dim = 32                  # transformer.d_model
    num_class = 8

    key = jax.random.PRNGKey(0)
    kx, kp = jax.random.split(key)
    x = jax.random.normal(kx, (B, C, H, W), jnp.float32)
    params = init_params(kp, C, hidden_dim, num_class)

    out = jax.block_until_ready(tranmodel_forward(x, params))
    ref = jax.block_until_ready(tranmodel_reference(x, params))

    assert out.shape == (B, num_class)
    # bf16 MXU operands -> relaxed tolerance vs the f32 reference.
    np.testing.assert_allclose(np.asarray(out), np.asarray(ref),
                               rtol=3e-2, atol=3e-2)
    print("KERNEL_OK")
</pallas_src>

<mosaic_0001>
module attributes {stable_mosaic.version = 11 : i64} {
  func.func @kernel(%arg0: i32, %arg1: memref<4x4x256xbf16, #tpu.memory_space<vmem>>, %arg2: memref<32x4xbf16, #tpu.memory_space<vmem>>, %arg3: memref<16x32xbf16, #tpu.memory_space<vmem>>, %arg4: memref<1x8xf32, #tpu.memory_space<vmem>>, %arg5: memref<1x4x8xf32, #tpu.memory_space<vmem>>) attributes {dimension_semantics = [#tpu.dimension_semantics<parallel>], iteration_bounds = array<i64: 1>, scalar_prefetch = 0 : i64, scratch_operands = 0 : i64, tpu.core_type = #tpu.core_type<tc>, window_params = [{transform_indices = @transform_0, window_bounds = array<i64: 4, 4, 256>}, {pipeline_mode = #tpu.pipeline_mode<synchronous>, transform_indices = @transform_1, window_bounds = array<i64: 32, 4>}, {pipeline_mode = #tpu.pipeline_mode<synchronous>, transform_indices = @transform_2, window_bounds = array<i64: 16, 32>}, {pipeline_mode = #tpu.pipeline_mode<synchronous>, transform_indices = @transform_3, window_bounds = array<i64: 1, 8>}, {transform_indices = @transform_4, window_bounds = array<i64: 1, 4, 8>}]} {
    %c0 = arith.constant 0 : index
    %c0_0 = arith.constant 0 : index
    %0 = vector.load %arg2[%c0, %c0_0] : memref<32x4xbf16, #tpu.memory_space<vmem>>, vector<32x4xbf16>
    %c0_1 = arith.constant 0 : index
    %c0_2 = arith.constant 0 : index
    %1 = vector.load %arg3[%c0_1, %c0_2] : memref<16x32xbf16, #tpu.memory_space<vmem>>, vector<16x32xbf16>
    %c0_3 = arith.constant 0 : index
    %c0_4 = arith.constant 0 : index
    %2 = vector.load %arg4[%c0_3, %c0_4] : memref<1x8xf32, #tpu.memory_space<vmem>>, vector<1x8xf32>
    %3 = vector.shape_cast %2 : vector<1x8xf32> to vector<8xf32>
    %c0_5 = arith.constant 0 : index
    %c0_6 = arith.constant 0 : index
    %c0_7 = arith.constant 0 : index
    %4 = vector.load %arg1[%c0_5, %c0_6, %c0_7] : memref<4x4x256xbf16, #tpu.memory_space<vmem>>, vector<1x4x256xbf16>
    %5 = vector.shape_cast %4 : vector<1x4x256xbf16> to vector<4x256xbf16>
    %cst = arith.constant dense<0.000000e+00> : vector<32x256xf32>
    %6 = tpu.matmul %0, %5, %cst {dimension_numbers = #tpu.dot_dimension_numbers<[1], [0], [0], [1], [0, 0, 1, 1], [], []>} : vector<32x4xbf16>, vector<4x256xbf16>, vector<32x256xf32> -> vector<32x256xf32>
    %7 = arith.truncf %6 : vector<32x256xf32> to vector<32x256xbf16>
    %cst_8 = arith.constant dense<0.000000e+00> : vector<16x256xf32>
    %8 = tpu.matmul %1, %7, %cst_8 {dimension_numbers = #tpu.dot_dimension_numbers<[1], [0], [0], [1], [0, 0, 1, 1], [], []>} : vector<16x32xbf16>, vector<32x256xbf16>, vector<16x256xf32> -> vector<16x256xf32>
    %9 = vector.extract_strided_slice %8 {offsets = [0, 0], sizes = [8, 256], strides = [1, 1]} : vector<16x256xf32> to vector<8x256xf32>
    %10 = vector.extract_strided_slice %8 {offsets = [8, 0], sizes = [8, 256], strides = [1, 1]} : vector<16x256xf32> to vector<8x256xf32>
    %cst_9 = arith.constant dense<0xFF800000> : vector<8xf32>
    %11 = vector.multi_reduction <maximumf>, %9, %cst_9 [1] : vector<8x256xf32> to vector<8xf32>
    %12 = vector.shape_cast %11 : vector<8xf32> to vector<8x1xf32>
    %13 = vector.broadcast %12 : vector<8x1xf32> to vector<8x256xf32>
    %14 = arith.subf %9, %13 : vector<8x256xf32>
    %15 = math.exp %14 : vector<8x256xf32>
    %cst_10 = arith.constant dense<0.000000e+00> : vector<8xf32>
    %16 = vector.multi_reduction <add>, %15, %cst_10 [1] : vector<8x256xf32> to vector<8xf32>
    %17 = arith.mulf %15, %10 : vector<8x256xf32>
    %cst_11 = arith.constant dense<0.000000e+00> : vector<8xf32>
    %18 = vector.multi_reduction <add>, %17, %cst_11 [1] : vector<8x256xf32> to vector<8xf32>
    %19 = tpu.reciprocal %16 {approx = true} : vector<8xf32> -> vector<8xf32>
    %20 = arith.mulf %18, %19 : vector<8xf32>
    %21 = arith.addf %20, %3 : vector<8xf32>
    %c0_12 = arith.constant 0 : index
    %c0_13 = arith.constant 0 : index
    %c0_14 = arith.constant 0 : index
    %22 = vector.load %arg5[%c0_12, %c0_13, %c0_14] : memref<1x4x8xf32, #tpu.memory_space<vmem>>, vector<1x1x8xf32>
    %23 = vector.shape_cast %22 : vector<1x1x8xf32> to vector<8xf32>
    %24 = vector.shape_cast %21 : vector<8xf32> to vector<1x1x8xf32>
    tpu.vector_store %arg5[%c0_12, %c0_13, %c0_14], %24 {strides = array<i32>} : memref<1x4x8xf32, #tpu.memory_space<vmem>>, vector<1x1x8xf32>,
    %c1 = arith.constant 1 : index
    %c0_15 = arith.constant 0 : index
    %c0_16 = arith.constant 0 : index
    %25 = vector.load %arg1[%c1, %c0_15, %c0_16] : memref<4x4x256xbf16, #tpu.memory_space<vmem>>, vector<1x4x256xbf16>
    %26 = vector.shape_cast %25 : vector<1x4x256xbf16> to vector<4x256xbf16>
    %cst_17 = arith.constant dense<0.000000e+00> : vector<32x256xf32>
    %27 = tpu.matmul %0, %26, %cst_17 {dimension_numbers = #tpu.dot_dimension_numbers<[1], [0], [0], [1], [0, 0, 1, 1], [], []>} : vector<32x4xbf16>, vector<4x256xbf16>, vector<32x256xf32> -> vector<32x256xf32>
    %28 = arith.truncf %27 : vector<32x256xf32> to vector<32x256xbf16>
    %cst_18 = arith.constant dense<0.000000e+00> : vector<16x256xf32>
    %29 = tpu.matmul %1, %28, %cst_18 {dimension_numbers = #tpu.dot_dimension_numbers<[1], [0], [0], [1], [0, 0, 1, 1], [], []>} : vector<16x32xbf16>, vector<32x256xbf16>, vector<16x256xf32> -> vector<16x256xf32>
    %30 = vector.extract_strided_slice %29 {offsets = [0, 0], sizes = [8, 256], strides = [1, 1]} : vector<16x256xf32> to vector<8x256xf32>
    %31 = vector.extract_strided_slice %29 {offsets = [8, 0], sizes = [8, 256], strides = [1, 1]} : vector<16x256xf32> to vector<8x256xf32>
    %cst_19 = arith.constant dense<0xFF800000> : vector<8xf32>
    %32 = vector.multi_reduction <maximumf>, %30, %cst_19 [1] : vector<8x256xf32> to vector<8xf32>
    %33 = vector.shape_cast %32 : vector<8xf32> to vector<8x1xf32>
    %34 = vector.broadcast %33 : vector<8x1xf32> to vector<8x256xf32>
    %35 = arith.subf %30, %34 : vector<8x256xf32>
    %36 = math.exp %35 : vector<8x256xf32>
    %cst_20 = arith.constant dense<0.000000e+00> : vector<8xf32>
    %37 = vector.multi_reduction <add>, %36, %cst_20 [1] : vector<8x256xf32> to vector<8xf32>
    %38 = arith.mulf %36, %31 : vector<8x256xf32>
    %cst_21 = arith.constant dense<0.000000e+00> : vector<8xf32>
    %39 = vector.multi_reduction <add>, %38, %cst_21 [1] : vector<8x256xf32> to vector<8xf32>
    %40 = tpu.reciprocal %37 {approx = true} : vector<8xf32> -> vector<8xf32>
    %41 = arith.mulf %39, %40 : vector<8xf32>
    %42 = arith.addf %41, %3 : vector<8xf32>
    %c0_22 = arith.constant 0 : index
    %c1_23 = arith.constant 1 : index
    %c0_24 = arith.constant 0 : index
    %43 = vector.load %arg5[%c0_22, %c1_23, %c0_24] : memref<1x4x8xf32, #tpu.memory_space<vmem>>, vector<1x1x8xf32>
    %44 = vector.shape_cast %43 : vector<1x1x8xf32> to vector<8xf32>
    %45 = vector.shape_cast %42 : vector<8xf32> to vector<1x1x8xf32>
    tpu.vector_store %arg5[%c0_22, %c1_23, %c0_24], %45 {strides = array<i32>} : memref<1x4x8xf32, #tpu.memory_space<vmem>>, vector<1x1x8xf32>,
    %c2 = arith.constant 2 : index
    %c0_25 = arith.constant 0 : index
    %c0_26 = arith.constant 0 : index
    %46 = vector.load %arg1[%c2, %c0_25, %c0_26] : memref<4x4x256xbf16, #tpu.memory_space<vmem>>, vector<1x4x256xbf16>
    %47 = vector.shape_cast %46 : vector<1x4x256xbf16> to vector<4x256xbf16>
    %cst_27 = arith.constant dense<0.000000e+00> : vector<32x256xf32>
    %48 = tpu.matmul %0, %47, %cst_27 {dimension_numbers = #tpu.dot_dimension_numbers<[1], [0], [0], [1], [0, 0, 1, 1], [], []>} : vector<32x4xbf16>, vector<4x256xbf16>, vector<32x256xf32> -> vector<32x256xf32>
    %49 = arith.truncf %48 : vector<32x256xf32> to vector<32x256xbf16>
    %cst_28 = arith.constant dense<0.000000e+00> : vector<16x256xf32>
    %50 = tpu.matmul %1, %49, %cst_28 {dimension_numbers = #tpu.dot_dimension_numbers<[1], [0], [0], [1], [0, 0, 1, 1], [], []>} : vector<16x32xbf16>, vector<32x256xbf16>, vector<16x256xf32> -> vector<16x256xf32>
    %51 = vector.extract_strided_slice %50 {offsets = [0, 0], sizes = [8, 256], strides = [1, 1]} : vector<16x256xf32> to vector<8x256xf32>
    %52 = vector.extract_strided_slice %50 {offsets = [8, 0], sizes = [8, 256], strides = [1, 1]} : vector<16x256xf32> to vector<8x256xf32>
    %cst_29 = arith.constant dense<0xFF800000> : vector<8xf32>
    %53 = vector.multi_reduction <maximumf>, %51, %cst_29 [1] : vector<8x256xf32> to vector<8xf32>
    %54 = vector.shape_cast %53 : vector<8xf32> to vector<8x1xf32>
    %55 = vector.broadcast %54 : vector<8x1xf32> to vector<8x256xf32>
    %56 = arith.subf %51, %55 : vector<8x256xf32>
    %57 = math.exp %56 : vector<8x256xf32>
    %cst_30 = arith.constant dense<0.000000e+00> : vector<8xf32>
    %58 = vector.multi_reduction <add>, %57, %cst_30 [1] : vector<8x256xf32> to vector<8xf32>
    %59 = arith.mulf %57, %52 : vector<8x256xf32>
    %cst_31 = arith.constant dense<0.000000e+00> : vector<8xf32>
    %60 = vector.multi_reduction <add>, %59, %cst_31 [1] : vector<8x256xf32> to vector<8xf32>
    %61 = tpu.reciprocal %58 {approx = true} : vector<8xf32> -> vector<8xf32>
    %62 = arith.mulf %60, %61 : vector<8xf32>
    %63 = arith.addf %62, %3 : vector<8xf32>
    %c0_32 = arith.constant 0 : index
    %c2_33 = arith.constant 2 : index
    %c0_34 = arith.constant 0 : index
    %64 = vector.load %arg5[%c0_32, %c2_33, %c0_34] : memref<1x4x8xf32, #tpu.memory_space<vmem>>, vector<1x1x8xf32>
    %65 = vector.shape_cast %64 : vector<1x1x8xf32> to vector<8xf32>
    %66 = vector.shape_cast %63 : vector<8xf32> to vector<1x1x8xf32>
    tpu.vector_store %arg5[%c0_32, %c2_33, %c0_34], %66 {strides = array<i32>} : memref<1x4x8xf32, #tpu.memory_space<vmem>>, vector<1x1x8xf32>,
    %c3 = arith.constant 3 : index
    %c0_35 = arith.constant 0 : index
    %c0_36 = arith.constant 0 : index
    %67 = vector.load %arg1[%c3, %c0_35, %c0_36] : memref<4x4x256xbf16, #tpu.memory_space<vmem>>, vector<1x4x256xbf16>
    %68 = vector.shape_cast %67 : vector<1x4x256xbf16> to vector<4x256xbf16>
    %cst_37 = arith.constant dense<0.000000e+00> : vector<32x256xf32>
    %69 = tpu.matmul %0, %68, %cst_37 {dimension_numbers = #tpu.dot_dimension_numbers<[1], [0], [0], [1], [0, 0, 1, 1], [], []>} : vector<32x4xbf16>, vector<4x256xbf16>, vector<32x256xf32> -> vector<32x256xf32>
    %70 = arith.truncf %69 : vector<32x256xf32> to vector<32x256xbf16>
    %cst_38 = arith.constant dense<0.000000e+00> : vector<16x256xf32>
    %71 = tpu.matmul %1, %70, %cst_38 {dimension_numbers = #tpu.dot_dimension_numbers<[1], [0], [0], [1], [0, 0, 1, 1], [], []>} : vector<16x32xbf16>, vector<32x256xbf16>, vector<16x256xf32> -> vector<16x256xf32>
    %72 = vector.extract_strided_slice %71 {offsets = [0, 0], sizes = [8, 256], strides = [1, 1]} : vector<16x256xf32> to vector<8x256xf32>
    %73 = vector.extract_strided_slice %71 {offsets = [8, 0], sizes = [8, 256], strides = [1, 1]} : vector<16x256xf32> to vector<8x256xf32>
    %cst_39 = arith.constant dense<0xFF800000> : vector<8xf32>
    %74 = vector.multi_reduction <maximumf>, %72, %cst_39 [1] : vector<8x256xf32> to vector<8xf32>
    %75 = vector.shape_cast %74 : vector<8xf32> to vector<8x1xf32>
    %76 = vector.broadcast %75 : vector<8x1xf32> to vector<8x256xf32>
    %77 = arith.subf %72, %76 : vector<8x256xf32>
    %78 = math.exp %77 : vector<8x256xf32>
    %cst_40 = arith.constant dense<0.000000e+00> : vector<8xf32>
    %79 = vector.multi_reduction <add>, %78, %cst_40 [1] : vector<8x256xf32> to vector<8xf32>
    %80 = arith.mulf %78, %73 : vector<8x256xf32>
    %cst_41 = arith.constant dense<0.000000e+00> : vector<8xf32>
    %81 = vector.multi_reduction <add>, %80, %cst_41 [1] : vector<8x256xf32> to vector<8xf32>
    %82 = tpu.reciprocal %79 {approx = true} : vector<8xf32> -> vector<8xf32>
    %83 = arith.mulf %81, %82 : vector<8xf32>
    %84 = arith.addf %83, %3 : vector<8xf32>
    %c0_42 = arith.constant 0 : index
    %c3_43 = arith.constant 3 : index
    %c0_44 = arith.constant 0 : index
    %85 = vector.load %arg5[%c0_42, %c3_43, %c0_44] : memref<1x4x8xf32, #tpu.memory_space<vmem>>, vector<1x1x8xf32>
    %86 = vector.shape_cast %85 : vector<1x1x8xf32> to vector<8xf32>
    %87 = vector.shape_cast %84 : vector<8xf32> to vector<1x1x8xf32>
    tpu.vector_store %arg5[%c0_42, %c3_43, %c0_44], %87 {strides = array<i32>} : memref<1x4x8xf32, #tpu.memory_space<vmem>>, vector<1x1x8xf32>,
    return
  }
  func.func @transform_0(%arg0: i32) -> (i32, i32, i32) {
    %c0_i32 = arith.constant 0 : i32
    %c0_i32_0 = arith.constant 0 : i32
    %c0_i32_1 = arith.constant 0 : i32
    return %arg0, %c0_i32, %c0_i32_0 : i32, i32, i32
  }
  func.func @transform_1(%arg0: i32) -> (i32, i32) {
    %c0_i32 = arith.constant 0 : i32
    %c0_i32_0 = arith.constant 0 : i32
    %c0_i32_1 = arith.constant 0 : i32
    return %c0_i32, %c0_i32_0 : i32, i32
  }
  func.func @transform_2(%arg0: i32) -> (i32, i32) {
    %c0_i32 = arith.constant 0 : i32
    %c0_i32_0 = arith.constant 0 : i32
    %c0_i32_1 = arith.constant 0 : i32
    return %c0_i32, %c0_i32_0 : i32, i32
  }
  func.func @transform_3(%arg0: i32) -> (i32, i32) {
    %c0_i32 = arith.constant 0 : i32
    %c0_i32_0 = arith.constant 0 : i32
    %c0_i32_1 = arith.constant 0 : i32
    return %c0_i32, %c0_i32_0 : i32, i32
  }
  func.func @transform_4(%arg0: i32) -> (i32, i32, i32) {
    %c0_i32 = arith.constant 0 : i32
    %c0_i32_0 = arith.constant 0 : i32
    %c0_i32_1 = arith.constant 0 : i32
    return %arg0, %c0_i32, %c0_i32_0 : i32, i32, i32
  }
}

</mosaic_0001>

<llo_original>
// kernel: tpu_custom_call.1
$region0: #{tpu_custom_call.1}
  #allocation0 [shape = 'u32[]', space=smem, size = 0x4, offset = 0x4, fixed_abs, tag = 'smem constant byte address 0x4 - core index']
  #allocation1 [shape = 'u32[144,128]{1,0:T(1,128)}', space=vmem, size = 0x12000, scoped, tag = 'internal scratch']
  %s0 = inlined_call_operand.vmem [shape: bf16[4,4,256], index: 0, kind: input, shape index: {}]
  %s1 = inlined_call_operand.vmem [shape: bf16[32,4], index: 1, kind: input, shape index: {}]
  %s2 = inlined_call_operand.hbm [shape: bf16[16,32], index: 2, kind: input, shape index: {}]
  %s3 = inlined_call_operand.vmem [shape: f32[1,8], index: 3, kind: input, shape index: {}]
  %s4 = inlined_call_operand.hbm [shape: f32[1,4,8], index: 4, kind: output, shape index: {}]
  %s5 = sld [smem:[#allocation0]]
  $region30: #{tpu_custom_call.1} parent=0
    _
  %s7 = ssub.s32 1, %s5
  %s8 = scalar_select 0, %s7, %s5
  $region1: #{tpu_custom_call.1} parent=0
    #allocation2 [shape = 'u8[4096]{0}', space=vmem, size = 0x1000, scoped, tag = 'input window, operand 2, single buffered']
    #allocation3 [shape = 's32[1]{0}', space=sflag, size = 0x4, scoped, tag = 'scoped memory for tpu_custom_call.1']
    #allocation4 [shape = 's32[1]{0}', space=sflag, size = 0x4, scoped, tag = 'scoped memory for tpu_custom_call.1']
    #allocation5 [shape = 'u8[2048]{0}', space=vmem, size = 0x800, scoped, tag = 'output window, operand 0, single buffered']
    %9 = vsyncpa [#allocation3], 0
    %10 = vsyncpa [#allocation4], 0
    // Predicated region
    $region2: #{tpu_custom_call.1} parent=1 // pred_check
      _
    $region3: #{tpu_custom_call.1} parent=1 // pred_check_branch
      %12 = sbr.rel (0) target = $region5
    $region4: #{tpu_custom_call.1} parent=1 // pred_region
      _
    $region5: #{tpu_custom_call.1} parent=1 // pred_fallthru
      _
    // Predicated region
    $region6: #{tpu_custom_call.1} parent=1 // pred_check
      _
    $region7: #{tpu_custom_call.1} parent=1 // pred_check_branch
      %14 = sbr.rel (0) target = $region9
    $region8: #{tpu_custom_call.1} parent=1 // pred_region
      _
    $region9: #{tpu_custom_call.1} parent=1 // pred_fallthru
      _
    // Predicated region
    $region10: #{tpu_custom_call.1} parent=1 // pred_check
      _
    $region11: #{tpu_custom_call.1} parent=1 // pred_check_branch
      %16 = sbr.rel (0) target = $region13
    $region12: #{tpu_custom_call.1} parent=1 // pred_region
      %s18 = ssub.s32 128, 128
      %19 = vsyncadd [#allocation3], %s18
      %s20 = sshll.u32 [#allocation2], 4
      %s21 = int_to_ptr.vmem [resolvable:$true] %s20
      %26 = dma.hbm_to_vmem [thread:$0]  %s2, 128, %s21, [#allocation3], 64, 64, 4
    $region13: #{tpu_custom_call.1} parent=1 // pred_fallthru
      _
    // Predicated region
    $region14: #{tpu_custom_call.1} parent=1 // pred_check
      _
    $region15: #{tpu_custom_call.1} parent=1 // pred_check_branch
      %28 = sbr.rel (0) target = $region17
    $region16: #{tpu_custom_call.1} parent=1 // pred_region
      _
    $region17: #{tpu_custom_call.1} parent=1 // pred_fallthru
      _
    // Predicated region
    $region18: #{tpu_custom_call.1} parent=1 // pred_check
      _
    $region19: #{tpu_custom_call.1} parent=1 // pred_check_branch
      %30 = sbr.rel (0) target = $region21
    $region20: #{tpu_custom_call.1} parent=1 // pred_region
      %31 = dma.done [#allocation3], 128
    $region21: #{tpu_custom_call.1} parent=1 // pred_fallthru
      _
    %v33 = vld [vmem:[%s1] sm:$0xf]
    %v34 = vld [vmem:[%s1 + $0x4] sm:$0xf]
    %v35 = vld [vmem:[%s1 + $0x8] sm:$0xf]
    %v36 = vld [vmem:[%s1 + $0xc] sm:$0xf]
    %v37 = vld [vmem:[#allocation2] sm:$0xf]
    %v38 = vld [vmem:[#allocation2 + $0x4] sm:$0xf]
    %v39 = vld [vmem:[%s3] sm:$0x1]
    %v40 = vld [vmem:[%s0] sm:$0xf]
    %v45 = vunpack.c.l.b16 %v33
    %v46 = vunpack.c.l.b16 %v34
    %v47 = vunpack.c.l.b16 %v35
    %v48 = vunpack.c.l.b16 %v36
    %v49 = vpack.c.b16 %v46, %v45
    %v50 = vpack.c.b16 %v48, %v47
    %v53 = vunpack.c.l.s4 1983009808
    %v54 = vunpack.c.0.s8 %v53
    %v55 = vlaneseq
    %v56 = vshrl.u32 %v55, 7
    %v57 = vsub.s32 %v54, %v56
    %v58 = vrot.slane %v40, %v57
    %v59 = vcombine.high %v58, %v58
    %vm60 = vcmask 31744
    %v62 = vsel %vm60, %v49, 0
    %v65 = vsel %vm60, %v50, 0
    %vm67 = vcmask 1041408
    %v69 = vsel %vm67, %v58, 0
    %v72 = vsel %vm67, %v59, 0
    %74 = vmatprep.subr.bf16.mxu0 0
    %75 = vmatpush1.bf16.msra.mxu0 0
    %76 = vmatprep.subr.bf16.mxu0 0
    %77 = vmatpush1.bf16.msra.mxu0 0
    %78 = vmatprep.subr.bf16.mxu0 0
    %79 = vmatpush1.bf16.msra.mxu0 0
    %80 = vmatprep.subr.bf16.mxu0 0
    %81 = vmatpush1.bf16.msra.mxu0 0
    %82 = vmatprep.subr.bf16.mxu0 0
    %83 = vmatpush1.bf16.msra.mxu0 0
    %84 = vmatprep.subr.bf16.mxu0 0
    %85 = vmatpush1.bf16.msra.mxu0 0
    %86 = vmatprep.subr.bf16.mxu0 0
    %87 = vmatpush1.bf16.msra.mxu0 0
    %88 = vmatprep.subr.bf16.mxu0 %v72
    %89 = vmatpush1.bf16.msra.mxu0 %v69
    %90 = vmatprep.subr.bf16.mxu0 0
    %91 = vmatpush2.bf16.msra.mxu0 0
    %92 = vmatprep.subr.bf16.mxu0 0
    %93 = vmatpush2.bf16.msra.mxu0 0
    %94 = vmatprep.subr.bf16.mxu0 0
    %95 = vmatpush2.bf16.msra.mxu0 0
    %96 = vmatprep.subr.bf16.mxu0 0
    %97 = vmatpush2.bf16.msra.mxu0 0
    %98 = vmatprep.subr.bf16.mxu0 0
    %99 = vmatpush2.bf16.msra.mxu0 0
    %100 = vmatprep.subr.bf16.mxu0 0
    %101 = vmatpush2.bf16.msra.mxu0 0
    %102 = vmatprep.subr.bf16.mxu0 0
    %103 = vmatpush2.bf16.msra.mxu0 0
    %104 = vmatprep.subr.bf16.mxu0 0
    %105 = vmatpush2.bf16.msra.mxu0 0
    %106 = vmatprep.mubr.bf16.mxu0 0
    %107 = vmatmul.mubr.bf16.gmra.mxu0 %v62
    %v108 = vpop.f32.mrf.mxu0
    %v109 = vadd.f32 0.0, %v108
    %v110 = vpop.f32.mrf.mxu0
    %v111 = vadd.f32 0.0, %v110
    %v112 = vpop.f32.mrf.mxu0
    %v113 = vadd.f32 0.0, %v112
    %v114 = vpop.f32.mrf.mxu0
    %v115 = vadd.f32 0.0, %v114
    %116 = vmatprep.mubr.bf16.mxu0 0
    %117 = vmatmul.mubr.bf16.gmra.mxu0 %v65
    %v118 = vpop.f32.mrf.mxu0
    %v119 = vadd.f32 0.0, %v118
    %v120 = vpop.f32.mrf.mxu0
    %v121 = vadd.f32 0.0, %v120
    %v122 = vpop.f32.mrf.mxu0
    %v123 = vadd.f32 0.0, %v122
    %v124 = vpop.f32.mrf.mxu0
    %v125 = vadd.f32 0.0, %v124
    %126 = vdwg.mxu0
    %v127 = vpack.c.bf16 %v113, %v109
    %v128 = vpack.c.bf16 %v115, %v111
    %v129 = vpack.c.bf16 %v123, %v119
    %v130 = vpack.c.bf16 %v125, %v121
    %v133 = vunpack.c.l.b16 %v37
    %v134 = vunpack.c.l.b16 %v38
    %v135 = vpack.c.b16 %v134, %v133
    %vm136 = vcmask 261120
    %v138 = vsel %vm136, %v135, 0
    %140 = vmatprep.subr.bf16.mxu0 0
    %141 = vmatpush1.bf16.msra.mxu0 0
    %142 = vmatprep.subr.bf16.mxu0 0
    %143 = vmatpush1.bf16.msra.mxu0 0
    %144 = vmatprep.subr.bf16.mxu0 0
    %145 = vmatpush1.bf16.msra.mxu0 0
    %146 = vmatprep.subr.bf16.mxu0 0
    %147 = vmatpush1.bf16.msra.mxu0 0
    %148 = vmatprep.subr.bf16.mxu0 0
    %149 = vmatpush1.bf16.msra.mxu0 0
    %150 = vmatprep.subr.bf16.mxu0 0
    %151 = vmatpush1.bf16.msra.mxu0 0
    %152 = vmatprep.subr.bf16.mxu0 %v130
    %153 = vmatpush1.bf16.msra.mxu0 %v129
    %154 = vmatprep.subr.bf16.mxu0 %v128
    %155 = vmatpush1.bf16.msra.mxu0 %v127
    %156 = vmatprep.subr.bf16.mxu0 0
    %157 = vmatpush2.bf16.msra.mxu0 0
    %158 = vmatprep.subr.bf16.mxu0 0
    %159 = vmatpush2.bf16.msra.mxu0 0
    %160 = vmatprep.subr.bf16.mxu0 0
    %161 = vmatpush2.bf16.msra.mxu0 0
    %162 = vmatprep.subr.bf16.mxu0 0
    %163 = vmatpush2.bf16.msra.mxu0 0
    %164 = vmatprep.subr.bf16.mxu0 0
    %165 = vmatpush2.bf16.msra.mxu0 0
    %166 = vmatprep.subr.bf16.mxu0 0
    %167 = vmatpush2.bf16.msra.mxu0 0
    %168 = vmatprep.subr.bf16.mxu0 0
    %169 = vmatpush2.bf16.msra.mxu0 0
    %170 = vmatprep.subr.bf16.mxu0 0
    %171 = vmatpush2.bf16.msra.mxu0 0
    %172 = vmatprep.mubr.bf16.mxu0 0
    %173 = vmatmul.mubr.bf16.gmra.mxu0 %v138
    %v174 = vpop.f32.mrf.mxu0
    %v175 = vadd.f32 0.0, %v174
    %v176 = vpop.f32.mrf.mxu0
    %v177 = vadd.f32 0.0, %v176
    %v178 = vpop.f32.mrf.mxu0
    %v179 = vadd.f32 0.0, %v178
    %v180 = vpop.f32.mrf.mxu0
    %v181 = vadd.f32 0.0, %v180
    %182 = vdwg.mxu0
    %v183 = vmax.f32 %v175, %v177
    %184 = vmax.xlane.f32.xlu0 %v183
    %v185 = vpop.xlane.xlu0 %184
    %v186 = vsub.f32 %v175, %v185
    %v187 = vsub.f32 %v177, %v185
    %v188 = vmul.f32 %v186, 1.442695
    %v189 = vpow.pop %v188
    %v190 = vmul.f32 %v187, 1.442695
    %v191 = vpow.pop %v190
    %v192 = vadd.f32 %v189, %v191
    %193 = vadd.xlane.f32.xlu0 %v192
    %v194 = vpop.xlane.xlu0 %193
    %v195 = vmul.f32 %v189, %v179
    %v196 = vmul.f32 %v191, %v181
    %v197 = vadd.f32 %v195, %v196
    %198 = vadd.xlane.f32.xlu0 %v197
    %v199 = vpop.xlane.xlu0 %198
    %v200 = vrcp.pop %v194
    %v201 = vmul.f32 %v199, %v200
    %v203 = vlaneseq
    %v204 = vshrl.u32 %v203, 7
    %v205 = vsub.s32 0, %v204
    %v206 = vrot.slane %v39, %v205
    %208 = vbcast.lane.b32.xlu0 %v206, 256
    %v209 = vpop.permute.xlu0 %208
    %v211 = vadd.f32 %v201, %v209
    %213 = vset.pattern.permute.xlu0 0
    %214 = vperm.xlu0 %213, %v211
    %v215 = vpop.permute.xlu0 %214
    %v216 = vlaneseq
    %v217 = vand.u32 %v216, 127
    %v218 = vlaneseq
    %v219 = vshrl.u32 %v218, 7
    %v220 = vsub.s32 %v217, %v219
    %v221 = vrot.slane %v215, %v220
    %vm223 = vcmask 57344
    %224 = vst.msk [vmem:[#allocation5] sm:$0x1] %vm223, %v221
    %s225 = scalar_lea.vmem %s0, 4
    %v226 = vld [vmem:[%s225] sm:$0xf]
    %v229 = vunpack.c.l.s4 1983009808
    %v230 = vunpack.c.0.s8 %v229
    %v231 = vlaneseq
    %v232 = vshrl.u32 %v231, 7
    %v233 = vsub.s32 %v230, %v232
    %v234 = vrot.slane %v226, %v233
    %v235 = vcombine.high %v234, %v234
    %v237 = vsel %vm67, %v234, 0
    %v240 = vsel %vm67, %v235, 0
    %242 = vmatprep.subr.bf16.mxu0 0
    %243 = vmatpush1.bf16.msra.mxu0 0
    %244 = vmatprep.subr.bf16.mxu0 0
    %245 = vmatpush1.bf16.msra.mxu0 0
    %246 = vmatprep.subr.bf16.mxu0 0
    %247 = vmatpush1.bf16.msra.mxu0 0
    %248 = vmatprep.subr.bf16.mxu0 0
    %249 = vmatpush1.bf16.msra.mxu0 0
    %250 = vmatprep.subr.bf16.mxu0 0
    %251 = vmatpush1.bf16.msra.mxu0 0
    %252 = vmatprep.subr.bf16.mxu0 0
    %253 = vmatpush1.bf16.msra.mxu0 0
    %254 = vmatprep.subr.bf16.mxu0 0
    %255 = vmatpush1.bf16.msra.mxu0 0
    %256 = vmatprep.subr.bf16.mxu0 %v240
    %257 = vmatpush1.bf16.msra.mxu0 %v237
    %258 = vmatprep.subr.bf16.mxu0 0
    %259 = vmatpush2.bf16.msra.mxu0 0
    %260 = vmatprep.subr.bf16.mxu0 0
    %261 = vmatpush2.bf16.msra.mxu0 0
    %262 = vmatprep.subr.bf16.mxu0 0
    %263 = vmatpush2.bf16.msra.mxu0 0
    %264 = vmatprep.subr.bf16.mxu0 0
    %265 = vmatpush2.bf16.msra.mxu0 0
    %266 = vmatprep.subr.bf16.mxu0 0
    %267 = vmatpush2.bf16.msra.mxu0 0
    %268 = vmatprep.subr.bf16.mxu0 0
    %269 = vmatpush2.bf16.msra.mxu0 0
    %270 = vmatprep.subr.bf16.mxu0 0
    %271 = vmatpush2.bf16.msra.mxu0 0
    %272 = vmatprep.subr.bf16.mxu0 0
    %273 = vmatpush2.bf16.msra.mxu0 0
    %274 = vmatprep.mubr.bf16.mxu0 0
    %275 = vmatmul.mubr.bf16.gmra.mxu0 %v62
    %v276 = vpop.f32.mrf.mxu0
    %v277 = vadd.f32 0.0, %v276
    %v278 = vpop.f32.mrf.mxu0
    %v279 = vadd.f32 0.0, %v278
    %v280 = vpop.f32.mrf.mxu0
    %v281 = vadd.f32 0.0, %v280
    %v282 = vpop.f32.mrf.mxu0
    %v283 = vadd.f32 0.0, %v282
    %284 = vmatprep.mubr.bf16.mxu0 0
    %285 = vmatmul.mubr.bf16.gmra.mxu0 %v65
    %v286 = vpop.f32.mrf.mxu0
    %v287 = vadd.f32 0.0, %v286
    %v288 = vpop.f32.mrf.mxu0
    %v289 = vadd.f32 0.0, %v288
    %v290 = vpop.f32.mrf.mxu0
    %v291 = vadd.f32 0.0, %v290
    %v292 = vpop.f32.mrf.mxu0
    %v293 = vadd.f32 0.0, %v292
    %294 = vdwg.mxu0
    %v295 = vpack.c.bf16 %v281, %v277
    %v296 = vpack.c.bf16 %v283, %v279
    %v297 = vpack.c.bf16 %v291, %v287
    %v298 = vpack.c.bf16 %v293, %v289
    %299 = vmatprep.subr.bf16.mxu0 0
    %300 = vmatpush1.bf16.msra.mxu0 0
    %301 = vmatprep.subr.bf16.mxu0 0
    %302 = vmatpush1.bf16.msra.mxu0 0
    %303 = vmatprep.subr.bf16.mxu0 0
    %304 = vmatpush1.bf16.msra.mxu0 0
    %305 = vmatprep.subr.bf16.mxu0 0
    %306 = vmatpush1.bf16.msra.mxu0 0
    %307 = vmatprep.subr.bf16.mxu0 0
    %308 = vmatpush1.bf16.msra.mxu0 0
    %309 = vmatprep.subr.bf16.mxu0 0
    %310 = vmatpush1.bf16.msra.mxu0 0
    %311 = vmatprep.subr.bf16.mxu0 %v298
    %312 = vmatpush1.bf16.msra.mxu0 %v297
    %313 = vmatprep.subr.bf16.mxu0 %v296
    %314 = vmatpush1.bf16.msra.mxu0 %v295
    %315 = vmatprep.subr.bf16.mxu0 0
    %316 = vmatpush2.bf16.msra.mxu0 0
    %317 = vmatprep.subr.bf16.mxu0 0
    %318 = vmatpush2.bf16.msra.mxu0 0
    %319 = vmatprep.subr.bf16.mxu0 0
    %320 = vmatpush2.bf16.msra.mxu0 0
    %321 = vmatprep.subr.bf16.mxu0 0
    %322 = vmatpush2.bf16.msra.mxu0 0
    %323 = vmatprep.subr.bf16.mxu0 0
    %324 = vmatpush2.bf16.msra.mxu0 0
    %325 = vmatprep.subr.bf16.mxu0 0
    %326 = vmatpush2.bf16.msra.mxu0 0
    %327 = vmatprep.subr.bf16.mxu0 0
    %328 = vmatpush2.bf16.msra.mxu0 0
    %329 = vmatprep.subr.bf16.mxu0 0
    %330 = vmatpush2.bf16.msra.mxu0 0
    %331 = vmatprep.mubr.bf16.mxu0 0
    %332 = vmatmul.mubr.bf16.gmra.mxu0 %v138
    %v333 = vpop.f32.mrf.mxu0
    %v334 = vadd.f32 0.0, %v333
    %v335 = vpop.f32.mrf.mxu0
    %v336 = vadd.f32 0.0, %v335
    %v337 = vpop.f32.mrf.mxu0
    %v338 = vadd.f32 0.0, %v337
    %v339 = vpop.f32.mrf.mxu0
    %v340 = vadd.f32 0.0, %v339
    %341 = vdwg.mxu0
    %v342 = vmax.f32 %v334, %v336
    %343 = vmax.xlane.f32.xlu0 %v342
    %v344 = vpop.xlane.xlu0 %343
    %v345 = vsub.f32 %v334, %v344
    %v346 = vsub.f32 %v336, %v344
    %v347 = vmul.f32 %v345, 1.442695
    %v348 = vpow.pop %v347
    %v349 = vmul.f32 %v346, 1.442695
    %v350 = vpow.pop %v349
    %v351 = vadd.f32 %v348, %v350
    %352 = vadd.xlane.f32.xlu0 %v351
    %v353 = vpop.xlane.xlu0 %352
    %v354 = vmul.f32 %v348, %v338
    %v355 = vmul.f32 %v350, %v340
    %v356 = vadd.f32 %v354, %v355
    %357 = vadd.xlane.f32.xlu0 %v356
    %v358 = vpop.xlane.xlu0 %357
    %v359 = vrcp.pop %v353
    %v360 = vmul.f32 %v358, %v359
    %v361 = vadd.f32 %v360, %v209
    %363 = vset.pattern.permute.xlu0 0
    %364 = vperm.xlu0 %363, %v361
    %v365 = vpop.permute.xlu0 %364
    %v366 = vlaneseq
    %v367 = vshrl.u32 %v366, 7
    %v368 = vsub.s32 %v217, %v367
    %v369 = vrot.slane %v365, %v368
    %371 = vst.msk [vmem:[#allocation5 + $0x1] sm:$0x1] %vm223, %v369
    %s372 = scalar_lea.vmem %s0, 8
    %v373 = vld [vmem:[%s372] sm:$0xf]
    %v376 = vunpack.c.l.s4 1983009808
    %v377 = vunpack.c.0.s8 %v376
    %v378 = vlaneseq
    %v379 = vshrl.u32 %v378, 7
    %v380 = vsub.s32 %v377, %v379
    %v381 = vrot.slane %v373, %v380
    %v382 = vcombine.high %v381, %v381
    %v384 = vsel %vm67, %v381, 0
    %v387 = vsel %vm67, %v382, 0
    %389 = vmatprep.subr.bf16.mxu0 0
    %390 = vmatpush1.bf16.msra.mxu0 0
    %391 = vmatprep.subr.bf16.mxu0 0
    %392 = vmatpush1.bf16.msra.mxu0 0
    %393 = vmatprep.subr.bf16.mxu0 0
    %394 = vmatpush1.bf16.msra.mxu0 0
    %395 = vmatprep.subr.bf16.mxu0 0
    %396 = vmatpush1.bf16.msra.mxu0 0
    %397 = vmatprep.subr.bf16.mxu0 0
    %398 = vmatpush1.bf16.msra.mxu0 0
    %399 = vmatprep.subr.bf16.mxu0 0
    %400 = vmatpush1.bf16.msra.mxu0 0
    %401 = vmatprep.subr.bf16.mxu0 0
    %402 = vmatpush1.bf16.msra.mxu0 0
    %403 = vmatprep.subr.bf16.mxu0 %v387
    %404 = vmatpush1.bf16.msra.mxu0 %v384
    %405 = vmatprep.subr.bf16.mxu0 0
    %406 = vmatpush2.bf16.msra.mxu0 0
    %407 = vmatprep.subr.bf16.mxu0 0
    %408 = vmatpush2.bf16.msra.mxu0 0
    %409 = vmatprep.subr.bf16.mxu0 0
    %410 = vmatpush2.bf16.msra.mxu0 0
    %411 = vmatprep.subr.bf16.mxu0 0
    %412 = vmatpush2.bf16.msra.mxu0 0
    %413 = vmatprep.subr.bf16.mxu0 0
    %414 = vmatpush2.bf16.msra.mxu0 0
    %415 = vmatprep.subr.bf16.mxu0 0
    %416 = vmatpush2.bf16.msra.mxu0 0
    %417 = vmatprep.subr.bf16.mxu0 0
    %418 = vmatpush2.bf16.msra.mxu0 0
    %419 = vmatprep.subr.bf16.mxu0 0
    %420 = vmatpush2.bf16.msra.mxu0 0
    %421 = vmatprep.mubr.bf16.mxu0 0
    %422 = vmatmul.mubr.bf16.gmra.mxu0 %v62
    %v423 = vpop.f32.mrf.mxu0
    %v424 = vadd.f32 0.0, %v423
    %v425 = vpop.f32.mrf.mxu0
    %v426 = vadd.f32 0.0, %v425
    %v427 = vpop.f32.mrf.mxu0
    %v428 = vadd.f32 0.0, %v427
    %v429 = vpop.f32.mrf.mxu0
    %v430 = vadd.f32 0.0, %v429
    %431 = vmatprep.mubr.bf16.mxu0 0
    %432 = vmatmul.mubr.bf16.gmra.mxu0 %v65
    %v433 = vpop.f32.mrf.mxu0
    %v434 = vadd.f32 0.0, %v433
    %v435 = vpop.f32.mrf.mxu0
    %v436 = vadd.f32 0.0, %v435
    %v437 = vpop.f32.mrf.mxu0
    %v438 = vadd.f32 0.0, %v437
    %v439 = vpop.f32.mrf.mxu0
    %v440 = vadd.f32 0.0, %v439
    %441 = vdwg.mxu0
    %v442 = vpack.c.bf16 %v428, %v424
    %v443 = vpack.c.bf16 %v430, %v426
    %v444 = vpack.c.bf16 %v438, %v434
    %v445 = vpack.c.bf16 %v440, %v436
    %446 = vmatprep.subr.bf16.mxu0 0
    %447 = vmatpush1.bf16.msra.mxu0 0
    %448 = vmatprep.subr.bf16.mxu0 0
    %449 = vmatpush1.bf16.msra.mxu0 0
    %450 = vmatprep.subr.bf16.mxu0 0
    %451 = vmatpush1.bf16.msra.mxu0 0
    %452 = vmatprep.subr.bf16.mxu0 0
    %453 = vmatpush1.bf16.msra.mxu0 0
    %454 = vmatprep.subr.bf16.mxu0 0
    %455 = vmatpush1.bf16.msra.mxu0 0
    %456 = vmatprep.subr.bf16.mxu0 0
    %457 = vmatpush1.bf16.msra.mxu0 0
    %458 = vmatprep.subr.bf16.mxu0 %v445
    %459 = vmatpush1.bf16.msra.mxu0 %v444
    %460 = vmatprep.subr.bf16.mxu0 %v443
    %461 = vmatpush1.bf16.msra.mxu0 %v442
    %462 = vmatprep.subr.bf16.mxu0 0
    %463 = vmatpush2.bf16.msra.mxu0 0
    %464 = vmatprep.subr.bf16.mxu0 0
    %465 = vmatpush2.bf16.msra.mxu0 0
    %466 = vmatprep.subr.bf16.mxu0 0
    %467 = vmatpush2.bf16.msra.mxu0 0
    %468 = vmatprep.subr.bf16.mxu0 0
    %469 = vmatpush2.bf16.msra.mxu0 0
    %470 = vmatprep.subr.bf16.mxu0 0
    %471 = vmatpush2.bf16.msra.mxu0 0
    %472 = vmatprep.subr.bf16.mxu0 0
    %473 = vmatpush2.bf16.msra.mxu0 0
    %474 = vmatprep.subr.bf16.mxu0 0
    %475 = vmatpush2.bf16.msra.mxu0 0
    %476 = vmatprep.subr.bf16.mxu0 0
    %477 = vmatpush2.bf16.msra.mxu0 0
    %478 = vmatprep.mubr.bf16.mxu0 0
    %479 = vmatmul.mubr.bf16.gmra.mxu0 %v138
    %v480 = vpop.f32.mrf.mxu0
    %v481 = vadd.f32 0.0, %v480
    %v482 = vpop.f32.mrf.mxu0
    %v483 = vadd.f32 0.0, %v482
    %v484 = vpop.f32.mrf.mxu0
    %v485 = vadd.f32 0.0, %v484
    %v486 = vpop.f32.mrf.mxu0
    %v487 = vadd.f32 0.0, %v486
    %488 = vdwg.mxu0
    %v489 = vmax.f32 %v481, %v483
    %490 = vmax.xlane.f32.xlu0 %v489
    %v491 = vpop.xlane.xlu0 %490
    %v492 = vsub.f32 %v481, %v491
    %v493 = vsub.f32 %v483, %v491
    %v494 = vmul.f32 %v492, 1.442695
    %v495 = vpow.pop %v494
    %v496 = vmul.f32 %v493, 1.442695
    %v497 = vpow.pop %v496
    %v498 = vadd.f32 %v495, %v497
    %499 = vadd.xlane.f32.xlu0 %v498
    %v500 = vpop.xlane.xlu0 %499
    %v501 = vmul.f32 %v495, %v485
    %v502 = vmul.f32 %v497, %v487
    %v503 = vadd.f32 %v501, %v502
    %504 = vadd.xlane.f32.xlu0 %v503
    %v505 = vpop.xlane.xlu0 %504
    %v506 = vrcp.pop %v500
    %v507 = vmul.f32 %v505, %v506
    %v508 = vadd.f32 %v507, %v209
    %510 = vset.pattern.permute.xlu0 0
    %511 = vperm.xlu0 %510, %v508
    %v512 = vpop.permute.xlu0 %511
    %v513 = vlaneseq
    %v514 = vshrl.u32 %v513, 7
    %v515 = vsub.s32 %v217, %v514
    %v516 = vrot.slane %v512, %v515
    %518 = vst.msk [vmem:[#allocation5 + $0x2] sm:$0x1] %vm223, %v516
    %s519 = scalar_lea.vmem %s0, 12
    %v520 = vld [vmem:[%s519] sm:$0xf]
    %v523 = vunpack.c.l.s4 1983009808
    %v524 = vunpack.c.0.s8 %v523
    %v525 = vlaneseq
    %v526 = vshrl.u32 %v525, 7
    %v527 = vsub.s32 %v524, %v526
    %v528 = vrot.slane %v520, %v527
    %v529 = vcombine.high %v528, %v528
    %v531 = vsel %vm67, %v528, 0
    %v534 = vsel %vm67, %v529, 0
    %536 = vmatprep.subr.bf16.mxu0 0
    %537 = vmatpush1.bf16.msra.mxu0 0
    %538 = vmatprep.subr.bf16.mxu0 0
    %539 = vmatpush1.bf16.msra.mxu0 0
    %540 = vmatprep.subr.bf16.mxu0 0
    %541 = vmatpush1.bf16.msra.mxu0 0
    %542 = vmatprep.subr.bf16.mxu0 0
    %543 = vmatpush1.bf16.msra.mxu0 0
    %544 = vmatprep.subr.bf16.mxu0 0
    %545 = vmatpush1.bf16.msra.mxu0 0
    %546 = vmatprep.subr.bf16.mxu0 0
    %547 = vmatpush1.bf16.msra.mxu0 0
    %548 = vmatprep.subr.bf16.mxu0 0
    %549 = vmatpush1.bf16.msra.mxu0 0
    %550 = vmatprep.subr.bf16.mxu0 %v534
    %551 = vmatpush1.bf16.msra.mxu0 %v531
    %552 = vmatprep.subr.bf16.mxu0 0
    %553 = vmatpush2.bf16.msra.mxu0 0
    %554 = vmatprep.subr.bf16.mxu0 0
    %555 = vmatpush2.bf16.msra.mxu0 0
    %556 = vmatprep.subr.bf16.mxu0 0
    %557 = vmatpush2.bf16.msra.mxu0 0
    %558 = vmatprep.subr.bf16.mxu0 0
    %559 = vmatpush2.bf16.msra.mxu0 0
    %560 = vmatprep.subr.bf16.mxu0 0
    %561 = vmatpush2.bf16.msra.mxu0 0
    %562 = vmatprep.subr.bf16.mxu0 0
    %563 = vmatpush2.bf16.msra.mxu0 0
    %564 = vmatprep.subr.bf16.mxu0 0
    %565 = vmatpush2.bf16.msra.mxu0 0
    %566 = vmatprep.subr.bf16.mxu0 0
    %567 = vmatpush2.bf16.msra.mxu0 0
    %568 = vmatprep.mubr.bf16.mxu0 0
    %569 = vmatmul.mubr.bf16.gmra.mxu0 %v62
    %v570 = vpop.f32.mrf.mxu0
    %v571 = vadd.f32 0.0, %v570
    %v572 = vpop.f32.mrf.mxu0
    %v573 = vadd.f32 0.0, %v572
    %v574 = vpop.f32.mrf.mxu0
    %v575 = vadd.f32 0.0, %v574
    %v576 = vpop.f32.mrf.mxu0
    %v577 = vadd.f32 0.0, %v576
    %578 = vmatprep.mubr.bf16.mxu0 0
    %579 = vmatmul.mubr.bf16.gmra.mxu0 %v65
    %v580 = vpop.f32.mrf.mxu0
    %v581 = vadd.f32 0.0, %v580
    %v582 = vpop.f32.mrf.mxu0
    %v583 = vadd.f32 0.0, %v582
    %v584 = vpop.f32.mrf.mxu0
    %v585 = vadd.f32 0.0, %v584
    %v586 = vpop.f32.mrf.mxu0
    %v587 = vadd.f32 0.0, %v586
    %588 = vdwg.mxu0
    %v589 = vpack.c.bf16 %v575, %v571
    %v590 = vpack.c.bf16 %v577, %v573
    %v591 = vpack.c.bf16 %v585, %v581
    %v592 = vpack.c.bf16 %v587, %v583
    %593 = vmatprep.subr.bf16.mxu0 0
    %594 = vmatpush1.bf16.msra.mxu0 0
    %595 = vmatprep.subr.bf16.mxu0 0
    %596 = vmatpush1.bf16.msra.mxu0 0
    %597 = vmatprep.subr.bf16.mxu0 0
    %598 = vmatpush1.bf16.msra.mxu0 0
    %599 = vmatprep.subr.bf16.mxu0 0
    %600 = vmatpush1.bf16.msra.mxu0 0
    %601 = vmatprep.subr.bf16.mxu0 0
    %602 = vmatpush1.bf16.msra.mxu0 0
    %603 = vmatprep.subr.bf16.mxu0 0
    %604 = vmatpush1.bf16.msra.mxu0 0
    %605 = vmatprep.subr.bf16.mxu0 %v592
    %606 = vmatpush1.bf16.msra.mxu0 %v591
    %607 = vmatprep.subr.bf16.mxu0 %v590
    %608 = vmatpush1.bf16.msra.mxu0 %v589
    %609 = vmatprep.subr.bf16.mxu0 0
    %610 = vmatpush2.bf16.msra.mxu0 0
    %611 = vmatprep.subr.bf16.mxu0 0
    %612 = vmatpush2.bf16.msra.mxu0 0
    %613 = vmatprep.subr.bf16.mxu0 0
    %614 = vmatpush2.bf16.msra.mxu0 0
    %615 = vmatprep.subr.bf16.mxu0 0
    %616 = vmatpush2.bf16.msra.mxu0 0
    %617 = vmatprep.subr.bf16.mxu0 0
    %618 = vmatpush2.bf16.msra.mxu0 0
    %619 = vmatprep.subr.bf16.mxu0 0
    %620 = vmatpush2.bf16.msra.mxu0 0
    %621 = vmatprep.subr.bf16.mxu0 0
    %622 = vmatpush2.bf16.msra.mxu0 0
    %623 = vmatprep.subr.bf16.mxu0 0
    %624 = vmatpush2.bf16.msra.mxu0 0
    %625 = vmatprep.mubr.bf16.mxu0 0
    %626 = vmatmul.mubr.bf16.gmra.mxu0 %v138
    %v627 = vpop.f32.mrf.mxu0
    %v628 = vadd.f32 0.0, %v627
    %v629 = vpop.f32.mrf.mxu0
    %v630 = vadd.f32 0.0, %v629
    %v631 = vpop.f32.mrf.mxu0
    %v632 = vadd.f32 0.0, %v631
    %v633 = vpop.f32.mrf.mxu0
    %v634 = vadd.f32 0.0, %v633
    %635 = vdwg.mxu0
    %v636 = vmax.f32 %v628, %v630
    %637 = vmax.xlane.f32.xlu0 %v636
    %v638 = vpop.xlane.xlu0 %637
    %v639 = vsub.f32 %v628, %v638
    %v640 = vsub.f32 %v630, %v638
    %v641 = vmul.f32 %v639, 1.442695
    %v642 = vpow.pop %v641
    %v643 = vmul.f32 %v640, 1.442695
    %v644 = vpow.pop %v643
    %v645 = vadd.f32 %v642, %v644
    %646 = vadd.xlane.f32.xlu0 %v645
    %v647 = vpop.xlane.xlu0 %646
    %v648 = vmul.f32 %v642, %v632
    %v649 = vmul.f32 %v644, %v634
    %v650 = vadd.f32 %v648, %v649
    %651 = vadd.xlane.f32.xlu0 %v650
    %v652 = vpop.xlane.xlu0 %651
    %v653 = vrcp.pop %v647
    %v654 = vmul.f32 %v652, %v653
    %v655 = vadd.f32 %v654, %v209
    %657 = vset.pattern.permute.xlu0 0
    %658 = vperm.xlu0 %657, %v655
    %v659 = vpop.permute.xlu0 %658
    %v660 = vlaneseq
    %v661 = vshrl.u32 %v660, 7
    %v662 = vsub.s32 %v217, %v661
    %v663 = vrot.slane %v659, %v662
    %665 = vst.msk [vmem:[#allocation5 + $0x3] sm:$0x1] %vm223, %v663
    // Predicated region
    $region22: #{tpu_custom_call.1} parent=1 // pred_check
      _
    $region23: #{tpu_custom_call.1} parent=1 // pred_check_branch
      %667 = sbr.rel (0) target = $region25
    $region24: #{tpu_custom_call.1} parent=1 // pred_region
      %s669 = ssub.s32 64, 64
      %670 = vsyncadd [#allocation4], %s669
      %s672 = sshll.u32 [#allocation5], 4
      %s673 = int_to_ptr.vmem [resolvable:$true] %s672
      %675 = dma.vmem_to_hbm [thread:$0]  %s673, 64, %s4, [#allocation4]
    $region25: #{tpu_custom_call.1} parent=1 // pred_fallthru
      _
    // Predicated region
    $region26: #{tpu_custom_call.1} parent=1 // pred_check
      _
    $region27: #{tpu_custom_call.1} parent=1 // pred_check_branch
      %677 = sbr.rel (0) target = $region29
    $region28: #{tpu_custom_call.1} parent=1 // pred_region
      %678 = dma.done [#allocation4], 64
    $region29: #{tpu_custom_call.1} parent=1 // pred_fallthru
      _
    %679 = vsyncpa [#allocation3], 1
    %680 = vsyncpa [#allocation4], 1

</llo_original>
